<compile_context>
chip_gen: v5e
topology: v5e:2x2
jax: 0.10.0
libtpu: 0.0.40
codegen_flags: <defaults>
</compile_context>

<pallas_src>
import functools

import jax
import jax.numpy as jnp
from jax.experimental import pallas as pl
from jax.experimental.pallas import tpu as pltpu

EPS = 0.1  # label smoothing (matches the PyTorch module)

# VMEM accounting: bytes of on-chip memory per logit element in one block.
#   2 * itemsize -> double-buffered native-dtype input stream
#   _K_INT * 4   -> f32 intermediates materialized by the lowering (conservative)
_K_INT = 4
_VMEM_LIMIT_BYTES = 48 * 1024 * 1024   # scoped limit: fits v5e/v6e (128 MiB) and v7x (64 MiB)
_VMEM_USE_BUDGET = 32 * 1024 * 1024    # target working set, leaves headroom under the limit
_ROW_TILE_CAP = 8192


def _round_up(x, m):
    return ((x + m - 1) // m) * m


def _write_tile_stats(out_ref, loss_sum, valid_cnt):
    """Write (loss_sum, valid_count) for this row tile into a lane-dense block.

    out_ref has shape (1, 8, 128): lane 0 of sublane 0 = loss sum,
    lane 1 of sublane 0 = valid row count, everything else 0.
    """
    shape = out_ref.shape
    sub = jax.lax.broadcasted_iota(jnp.int32, shape, len(shape) - 2)
    lane = jax.lax.broadcasted_iota(jnp.int32, shape, len(shape) - 1)
    out = jnp.where((sub == 0) & (lane == 0), loss_sum, jnp.float32(0.0))
    out = jnp.where((sub == 0) & (lane == 1), valid_cnt, out)
    out_ref[...] = out


# ----------------------------------------------------------------------------
# Kernel 1 (common case): full class axis in one block -> single pass, no scratch.
# ----------------------------------------------------------------------------
def _ce_single_pass_kernel(x_ref, t_ref, out_ref, *, n_rows, num_classes, ignore_idx):
    i = pl.program_id(0)                      # row-tile index ("parallel")
    tm, tc = x_ref.shape                      # tc == num_classes

    x = x_ref[...].astype(jnp.float32)        # (tm, C)
    t = t_ref[...]                            # (tm, 1) int32

    col = jax.lax.broadcasted_iota(jnp.int32, (tm, tc), 1)
    row = jax.lax.broadcasted_iota(jnp.int32, (tm, 1), 0) + i * tm
    valid = (t != ignore_idx) & (row < n_rows)            # (tm, 1)

    m = jnp.max(x, axis=-1, keepdims=True)                 # (tm, 1)
    l = jnp.sum(jnp.exp(x - m), axis=-1, keepdims=True)    # (tm, 1)
    logz = m + jnp.log(l)
    sx = jnp.sum(x, axis=-1, keepdims=True)                # sum of logits (smoothing term)
    g = jnp.sum(jnp.where(col == t, x, 0.0), axis=-1, keepdims=True)   # x[t]

    per_row = (1.0 - EPS) * (logz - g) + EPS * (logz - sx / float(num_classes))
    per_row = jnp.where(valid, per_row, 0.0)
    cnt_row = jnp.where(valid, 1.0, 0.0)

    _write_tile_stats(out_ref, jnp.sum(per_row), jnp.sum(cnt_row))


# ----------------------------------------------------------------------------
# Kernel 2 (fallback, huge vocab): class-tiled online-LSE with packed scratch.
# ----------------------------------------------------------------------------
def _ce_class_tiled_kernel(x_ref, t_ref, out_ref, stats_ref, *,
                           n_rows, num_classes, ignore_idx, ragged):
    i = pl.program_id(0)                      # row tile ("parallel")
    j = pl.program_id(1)                      # class tile ("arbitrary", innermost)
    nj = pl.num_programs(1)
    tm, tc = x_ref.shape

    lane4 = jax.lax.broadcasted_iota(jnp.int32, (tm, 4), 1)   # stats lanes: [m, l, sx, g]

    @pl.when(j == 0)
    def _():
        stats_ref[...] = jnp.where(lane4 == 0, -jnp.inf, 0.0).astype(jnp.float32)

    x = x_ref[...].astype(jnp.float32)        # (tm, tc)
    t = t_ref[...]                            # (tm, 1) int32

    # j-independent lane iota; compare against the shifted target instead of
    # building col = iota + j*tc each step.
    col = jax.lax.broadcasted_iota(jnp.int32, (tm, tc), 1)
    t_local = t - j * tc

    if ragged:  # static: only emitted when C % tc != 0 (tc is normally a divisor of C)
        class_ok = col < (num_classes - j * tc)
        x_for_max = jnp.where(class_ok, x, -jnp.inf)
        x_for_sum = jnp.where(class_ok, x, 0.0)
    else:
        x_for_max = x
        x_for_sum = x

    stats = stats_ref[...]                    # single packed load (tm, 4)
    m_prev = stats[:, 0:1]
    l_prev = stats[:, 1:2]
    sx_prev = stats[:, 2:3]
    g_prev = stats[:, 3:4]

    # online (flash-style) log-sum-exp across class tiles
    local_max = jnp.max(x_for_max, axis=-1, keepdims=True)
    m_new = jnp.maximum(m_prev, local_max)
    alpha = jnp.exp(m_prev - m_new)
    l_new = alpha * l_prev + jnp.sum(jnp.exp(x_for_max - m_new), axis=-1, keepdims=True)
    sx_new = sx_prev + jnp.sum(x_for_sum, axis=-1, keepdims=True)
    # padded class columns can never match a legitimate target, so unmasked x is safe here
    g_new = g_prev + jnp.sum(jnp.where(col == t_local, x, 0.0), axis=-1, keepdims=True)

    # single packed store
    stats_ref[...] = jnp.where(
        lane4 == 0, m_new,
        jnp.where(lane4 == 1, l_new,
                  jnp.where(lane4 == 2, sx_new, g_new)))

    @pl.when(j == nj - 1)
    def _():
        logz = m_new + jnp.log(l_new)
        per_row = (1.0 - EPS) * (logz - g_new) + EPS * (logz - sx_new / float(num_classes))
        row = jax.lax.broadcasted_iota(jnp.int32, (tm, 1), 0) + i * tm
        valid = (t != ignore_idx) & (row < n_rows)
        per_row = jnp.where(valid, per_row, 0.0)
        cnt_row = jnp.where(valid, 1.0, 0.0)
        _write_tile_stats(out_ref, jnp.sum(per_row), jnp.sum(cnt_row))


# ----------------------------------------------------------------------------
# Wrapper
# ----------------------------------------------------------------------------
def _pick_class_tile(c, budget_tc):
    """Largest lane-dense class tile; prefer a multiple-of-128 divisor of C so
    no per-tile ragged masking is needed (unless that divisor is << budget)."""
    max_tc = max(128, (budget_tc // 128) * 128)
    if c % 128 == 0:
        tc = max_tc
        while tc >= max(128, max_tc // 4):
            if c % tc == 0:
                return tc
            tc -= 128
    return max_tc


def cross_entropy_loss(logits, targets, ignore_idx=0,
                       vmem_use_budget=_VMEM_USE_BUDGET,
                       vmem_limit_bytes=_VMEM_LIMIT_BYTES,
                       row_tile_cap=_ROW_TILE_CAP):
    """logits: (..., C) float; targets: (...) int.  Returns scalar f32 loss."""
    c = logits.shape[-1]
    x = logits.reshape(-1, c)                         # native dtype; no wrapper cast/copy
    t = targets.reshape(-1).astype(jnp.int32).reshape(-1, 1)
    n = x.shape[0]

    itemsize = jnp.dtype(x.dtype).itemsize
    per_elem = 2 * itemsize + _K_INT * 4              # VMEM bytes per logit element in a block

    def _row_tile(tc):
        tm = vmem_use_budget // (tc * per_elem)
        tm = min(tm, row_tile_cap, _round_up(n, 8))
        if n > 8:
            # at least 2 row tiles so both v7x TensorCores get work on the parallel axis
            tm = min(tm, _round_up(pl.cdiv(n, 2), 8))
        return max(8, (tm // 8) * 8)

    single_pass = (8 * c * per_elem) <= vmem_use_budget

    if single_pass:
        tm = _row_tile(c)
        grid_rows = pl.cdiv(n, tm)
        kernel = functools.partial(_ce_single_pass_kernel,
                                   n_rows=n, num_classes=c, ignore_idx=ignore_idx)
        parts = pl.pallas_call(
            kernel,
            out_shape=jax.ShapeDtypeStruct((grid_rows, 8, 128), jnp.float32),
            grid_spec=pltpu.PrefetchScalarGridSpec(
                num_scalar_prefetch=0,
                grid=(grid_rows,),
                in_specs=[
                    pl.BlockSpec((tm, c), lambda i: (i, 0)),    # logits (full class axis)
                    pl.BlockSpec((tm, 1), lambda i: (i, 0)),    # targets
                ],
                out_specs=pl.BlockSpec((1, 8, 128), lambda i: (i, 0, 0)),
            ),
            compiler_params=pltpu.CompilerParams(
                dimension_semantics=("parallel",),
                vmem_limit_bytes=vmem_limit_bytes),
        )(x, t)
    else:
        tc = _pick_class_tile(c, vmem_use_budget // (8 * per_elem))
        tm = _row_tile(tc)
        grid_rows = pl.cdiv(n, tm)
        kernel = functools.partial(_ce_class_tiled_kernel,
                                   n_rows=n, num_classes=c, ignore_idx=ignore_idx,
                                   ragged=(c % tc != 0))
        parts = pl.pallas_call(
            kernel,
            out_shape=jax.ShapeDtypeStruct((grid_rows, 8, 128), jnp.float32),
            grid_spec=pltpu.PrefetchScalarGridSpec(
                num_scalar_prefetch=0,
                grid=(grid_rows, pl.cdiv(c, tc)),
                in_specs=[
                    pl.BlockSpec((tm, tc), lambda i, j: (i, j)),   # logits
                    pl.BlockSpec((tm, 1), lambda i, j: (i, 0)),    # targets
                ],
                out_specs=pl.BlockSpec((1, 8, 128), lambda i, j: (i, 0, 0)),
                scratch_shapes=[pltpu.VMEM((tm, 4), jnp.float32)],  # packed [m, l, sx, g]
            ),
            compiler_params=pltpu.CompilerParams(
                dimension_semantics=("parallel", "arbitrary"),
                vmem_limit_bytes=vmem_limit_bytes),
        )(x, t)

    loss_sum = jnp.sum(parts[:, 0, 0])
    valid_cnt = jnp.sum(parts[:, 0, 1])
    # NOTE: if every target == ignore_idx this is 0/0 -> NaN, matching PyTorch mean reduction.
    return loss_sum / valid_cnt


def _reference(logits, targets, ignore_idx=0):
    c = logits.shape[-1]
    x = logits.reshape(-1, c).astype(jnp.float32)
    t = targets.reshape(-1).astype(jnp.int32)
    logp = jax.nn.log_softmax(x, axis=-1)
    nll = -jnp.take_along_axis(logp, t[:, None], axis=-1)[:, 0]
    smooth = -jnp.mean(logp, axis=-1)
    per = (1.0 - EPS) * nll + EPS * smooth
    valid = (t != ignore_idx).astype(jnp.float32)
    return jnp.sum(per * valid) / jnp.sum(valid)


if __name__ == "__main__":
    key = jax.random.PRNGKey(0)
    k1, k2, k3, k4 = jax.random.split(key, 4)

    # Small shapes consistent with the module: batch=2, seq=8, vocab=32.
    B, S, C = 2, 8, 32
    logits = jax.random.normal(k1, (B, S, C), dtype=jnp.float32)
    targets = jax.random.randint(k2, (B, S), 0, C, dtype=jnp.int32)
    targets = targets.at[0, 0].set(0)          # make sure ignore_index rows are exercised

    loss = jax.block_until_ready(cross_entropy_loss(logits, targets, ignore_idx=0))
    ref = _reference(logits, targets, ignore_idx=0)
    assert jnp.allclose(loss, ref, rtol=1e-5, atol=1e-5), (loss, ref)

    # Also exercise the class-tiled (huge-vocab) fallback path with a tiny forced
    # VMEM budget: divisor class tile (C=256) and ragged class tile (C=320),
    # streaming bf16 logits.
    for C2 in (256, 320):
        lg = jax.random.normal(k3, (B, S, C2), dtype=jnp.bfloat16)
        tg = jax.random.randint(k4, (B, S), 0, C2, dtype=jnp.int32)
        out = jax.block_until_ready(
            cross_entropy_loss(lg, tg, ignore_idx=0, vmem_use_budget=16 * 1024))
        ref2 = _reference(lg, tg, ignore_idx=0)
        assert jnp.allclose(out, ref2, rtol=1e-3, atol=1e-3), (C2, out, ref2)

    print("KERNEL_OK")
</pallas_src>

<mosaic_0001>
module attributes {stable_mosaic.version = 11 : i64} {
  func.func @_ce_single_pass_kernel(%arg0: i32, %arg1: memref<8x32xf32, #tpu.memory_space<vmem>>, %arg2: memref<8x1xi32, #tpu.memory_space<vmem>>, %arg3: memref<1x8x128xf32, #tpu.memory_space<vmem>>) attributes {dimension_semantics = [#tpu.dimension_semantics<parallel>], iteration_bounds = array<i64: 2>, scalar_prefetch = 0 : i64, scratch_operands = 0 : i64, tpu.core_type = #tpu.core_type<tc>, window_params = [{transform_indices = @transform_0, window_bounds = array<i64: 8, 32>}, {transform_indices = @transform_1, window_bounds = array<i64: 8, 1>}, {transform_indices = @transform_2, window_bounds = array<i64: 1, 8, 128>}]} {
    %c0 = arith.constant 0 : index
    %c0_0 = arith.constant 0 : index
    %0 = vector.load %arg1[%c0, %c0_0] : memref<8x32xf32, #tpu.memory_space<vmem>>, vector<8x32xf32>
    %c0_1 = arith.constant 0 : index
    %c0_2 = arith.constant 0 : index
    %1 = vector.load %arg2[%c0_1, %c0_2] : memref<8x1xi32, #tpu.memory_space<vmem>>, vector<8x1xi32>
    %2 = tpu.iota {dimensions = array<i32: 1>} : vector<8x32xi32>
    %3 = tpu.iota {dimensions = array<i32: 0>} : vector<8x1xi32>
    %c8_i32 = arith.constant 8 : i32
    %4 = arith.muli %arg0, %c8_i32 : i32
    %5 = vector.broadcast %4 : i32 to vector<8x1xi32>
    %6 = arith.addi %3, %5 : vector<8x1xi32>
    %c0_i32 = arith.constant 0 : i32
    %7 = vector.broadcast %c0_i32 : i32 to vector<8x1xi32>
    %8 = arith.cmpi ne, %1, %7 : vector<8x1xi32>
    %c16_i32 = arith.constant 16 : i32
    %9 = vector.broadcast %c16_i32 : i32 to vector<8x1xi32>
    %10 = arith.cmpi slt, %6, %9 : vector<8x1xi32>
    %11 = arith.andi %8, %10 : vector<8x1xi1>
    %cst = arith.constant dense<0xFF800000> : vector<8xf32>
    %12 = vector.multi_reduction <maximumf>, %0, %cst [1] : vector<8x32xf32> to vector<8xf32>
    %13 = vector.shape_cast %12 : vector<8xf32> to vector<8x1xf32>
    %14 = vector.broadcast %13 : vector<8x1xf32> to vector<8x32xf32>
    %15 = arith.subf %0, %14 : vector<8x32xf32>
    %16 = math.exp %15 : vector<8x32xf32>
    %cst_3 = arith.constant dense<0.000000e+00> : vector<8xf32>
    %17 = vector.multi_reduction <add>, %16, %cst_3 [1] : vector<8x32xf32> to vector<8xf32>
    %18 = vector.shape_cast %17 : vector<8xf32> to vector<8x1xf32>
    %19 = math.log %18 : vector<8x1xf32>
    %20 = arith.addf %13, %19 : vector<8x1xf32>
    %cst_4 = arith.constant dense<0.000000e+00> : vector<8xf32>
    %21 = vector.multi_reduction <add>, %0, %cst_4 [1] : vector<8x32xf32> to vector<8xf32>
    %22 = vector.shape_cast %21 : vector<8xf32> to vector<8x1xf32>
    %23 = vector.broadcast %1 : vector<8x1xi32> to vector<8x32xi32>
    %24 = arith.cmpi eq, %2, %23 : vector<8x32xi32>
    %cst_5 = arith.constant 0.000000e+00 : f32
    %25 = vector.broadcast %cst_5 : f32 to vector<8x32xf32>
    %26 = arith.select %24, %0, %25 : vector<8x32xi1>, vector<8x32xf32>
    %cst_6 = arith.constant dense<0.000000e+00> : vector<8xf32>
    %27 = vector.multi_reduction <add>, %26, %cst_6 [1] : vector<8x32xf32> to vector<8xf32>
    %28 = vector.shape_cast %27 : vector<8xf32> to vector<8x1xf32>
    %29 = arith.subf %20, %28 : vector<8x1xf32>
    %cst_7 = arith.constant 0.899999976 : f32
    %30 = vector.broadcast %cst_7 : f32 to vector<8x1xf32>
    %31 = arith.mulf %30, %29 : vector<8x1xf32>
    %cst_8 = arith.constant 3.200000e+01 : f32
    %32 = vector.broadcast %cst_8 : f32 to vector<8x1xf32>
    %33 = arith.divf %22, %32 : vector<8x1xf32>
    %34 = arith.subf %20, %33 : vector<8x1xf32>
    %cst_9 = arith.constant 1.000000e-01 : f32
    %35 = vector.broadcast %cst_9 : f32 to vector<8x1xf32>
    %36 = arith.mulf %35, %34 : vector<8x1xf32>
    %37 = arith.addf %31, %36 : vector<8x1xf32>
    %cst_10 = arith.constant 0.000000e+00 : f32
    %38 = vector.broadcast %cst_10 : f32 to vector<8x1xf32>
    %39 = arith.select %11, %37, %38 : vector<8x1xi1>, vector<8x1xf32>
    %cst_11 = arith.constant 1.000000e+00 : f32
    %cst_12 = arith.constant 0.000000e+00 : f32
    %40 = vector.broadcast %cst_11 : f32 to vector<8x1xf32>
    %41 = vector.broadcast %cst_12 : f32 to vector<8x1xf32>
    %42 = arith.select %11, %40, %41 : vector<8x1xi1>, vector<8x1xf32>
    %43 = vector.shape_cast %39 : vector<8x1xf32> to vector<1x8x1xf32>
    %cst_13 = arith.constant dense<0.000000e+00> : vector<1xf32>
    %44 = vector.multi_reduction <add>, %43, %cst_13 [1, 2] : vector<1x8x1xf32> to vector<1xf32>
    %45 = vector.shape_cast %44 : vector<1xf32> to vector<1x1x1xf32>
    %46 = vector.extract %45[0, 0, 0] : f32 from vector<1x1x1xf32>
    %47 = vector.shape_cast %42 : vector<8x1xf32> to vector<1x8x1xf32>
    %cst_14 = arith.constant dense<0.000000e+00> : vector<1xf32>
    %48 = vector.multi_reduction <add>, %47, %cst_14 [1, 2] : vector<1x8x1xf32> to vector<1xf32>
    %49 = vector.shape_cast %48 : vector<1xf32> to vector<1x1x1xf32>
    %50 = vector.extract %49[0, 0, 0] : f32 from vector<1x1x1xf32>
    %51 = tpu.iota {dimensions = array<i32: 1>} : vector<1x8x128xi32>
    %52 = tpu.iota {dimensions = array<i32: 2>} : vector<1x8x128xi32>
    %c0_i32_15 = arith.constant 0 : i32
    %53 = vector.broadcast %c0_i32_15 : i32 to vector<1x8x128xi32>
    %54 = arith.cmpi eq, %51, %53 : vector<1x8x128xi32>
    %c0_i32_16 = arith.constant 0 : i32
    %55 = vector.broadcast %c0_i32_16 : i32 to vector<1x8x128xi32>
    %56 = arith.cmpi eq, %52, %55 : vector<1x8x128xi32>
    %57 = arith.andi %54, %56 : vector<1x8x128xi1>
    %cst_17 = arith.constant 0.000000e+00 : f32
    %58 = vector.broadcast %46 : f32 to vector<1x8x128xf32>
    %59 = vector.broadcast %cst_17 : f32 to vector<1x8x128xf32>
    %60 = arith.select %57, %58, %59 : vector<1x8x128xi1>, vector<1x8x128xf32>
    %c0_i32_18 = arith.constant 0 : i32
    %61 = vector.broadcast %c0_i32_18 : i32 to vector<1x8x128xi32>
    %62 = arith.cmpi eq, %51, %61 : vector<1x8x128xi32>
    %c1_i32 = arith.constant 1 : i32
    %63 = vector.broadcast %c1_i32 : i32 to vector<1x8x128xi32>
    %64 = arith.cmpi eq, %52, %63 : vector<1x8x128xi32>
    %65 = arith.andi %62, %64 : vector<1x8x128xi1>
    %66 = vector.broadcast %50 : f32 to vector<1x8x128xf32>
    %67 = arith.select %65, %66, %60 : vector<1x8x128xi1>, vector<1x8x128xf32>
    %c0_19 = arith.constant 0 : index
    %c0_20 = arith.constant 0 : index
    %c0_21 = arith.constant 0 : index
    %68 = vector.load %arg3[%c0_19, %c0_20, %c0_21] : memref<1x8x128xf32, #tpu.memory_space<vmem>>, vector<1x8x128xf32>
    tpu.vector_store %arg3[%c0_19, %c0_20, %c0_21], %67 {strides = array<i32>} : memref<1x8x128xf32, #tpu.memory_space<vmem>>, vector<1x8x128xf32>,
    return
  }
  func.func @transform_0(%arg0: i32) -> (i32, i32) {
    %c0_i32 = arith.constant 0 : i32
    %c0_i32_0 = arith.constant 0 : i32
    return %arg0, %c0_i32 : i32, i32
  }
  func.func @transform_1(%arg0: i32) -> (i32, i32) {
    %c0_i32 = arith.constant 0 : i32
    %c0_i32_0 = arith.constant 0 : i32
    return %arg0, %c0_i32 : i32, i32
  }
  func.func @transform_2(%arg0: i32) -> (i32, i32, i32) {
    %c0_i32 = arith.constant 0 : i32
    %c0_i32_0 = arith.constant 0 : i32
    %c0_i32_1 = arith.constant 0 : i32
    return %arg0, %c0_i32, %c0_i32_0 : i32, i32, i32
  }
}

</mosaic_0001>

<llo_original>
// kernel: tpu_custom_call.1
$region0: #{tpu_custom_call.1}
  #allocation0 [shape = 'u32[]', space=smem, size = 0x4, offset = 0x4, fixed_abs, tag = 'smem constant byte address 0x4 - core index']
  #allocation1 [shape = 'u32[72,128]{1,0:T(1,128)}', space=vmem, size = 0x9000, scoped, tag = 'internal scratch']
  %s0 = inlined_call_operand.vmem [shape: f32[16,32], index: 0, kind: input, shape index: {}]
  %s1 = inlined_call_operand.vmem [shape: s32[16,1], index: 1, kind: input, shape index: {}]
  %s2 = inlined_call_operand.hbm [shape: f32[2,8,128], index: 2, kind: output, shape index: {}]
  %s3 = sld [smem:[#allocation0]]
  $region41: #{tpu_custom_call.1} parent=0
    _
  %s5 = ssub.s32 1, %s3
  %s6 = scalar_select 0, %s5, %s3
  $region1: #{tpu_custom_call.1} parent=0
    #allocation2 [shape = 'u8[8192]{0}', space=vmem, size = 0x2000, scoped, tag = 'output window, operand 0']
    #allocation3 [shape = 's32[2]{0}', space=sflag, size = 0x8, scoped, tag = 'scoped memory for tpu_custom_call.1']
    %7 = vsyncpa [#allocation3], 0
    %s8 = scalar_lea.sflag [#allocation3], 1
    %9 = vsyncpa %s8, 0
    loop: start=0, step=1, limit=4
    $region2: #{tpu_custom_call.1} parent=1 // loop_pre_header
      _
    $region3: #{tpu_custom_call.1} parent=1 // loop_header
      %s11 = sphi 0, %s15
      %p12 = scmp.ge.s32.totalorder %s11, 4
      %s21 = sphi 0, %s23
      %s24 = sphi 0, %s21
      %s25 = sphi 0, %s24
      %s41 = sphi 0, %s25
      %s47 = sphi 0, %s49
      %s50 = sphi 0, %s47
      %s51 = sphi 0, %s50
      %s67 = sphi 0, %s51
      %s73 = sphi 0, %s75
      %s76 = sphi 0, %s73
      %s77 = sphi 0, %s76
      %s93 = sphi 0, %s77
    $region4: #{tpu_custom_call.1} parent=1 // loop_header_branch
      %14 = sbr.rel (%p12) target = $region8
    $region5: #{tpu_custom_call.1} parent=1 // loop_body
      %s16 = ssub.s32 %s11, 1
      %s17 = ssub.s32 %s11, 2
      %s18 = sadd.s32 %s11, 1
      %s19 = ssub.s32 %s11, %s18
      %p20 = scmp.eq.s32.totalorder %s19, 0
      %s22 = sadd.s32 %s21, 1
      %s23 = scalar_select %p20, %s21, %s22
      %p26 = pneg %p20
      %p27 = scmp.eq.s32.totalorder %s11, 1
      %p28 = por %p26, %p27
      %p29 = scmp.ne.s32.totalorder %s21, %s24
      %p30 = scmp.eq.s32.totalorder %s11, 0
      %p31 = por %p29, %p30
      %p32 = scmp.ne.s32.totalorder %s21, %s24
      %p33 = scmp.eq.s32.totalorder %s16, 1
      %p34 = por %p32, %p33
      %p35 = scmp.ne.s32.totalorder %s24, %s25
      %p36 = scmp.eq.s32.totalorder %s16, 0
      %p37 = por %p35, %p36
      %p38 = scmp.ne.s32.totalorder %s24, %s25
      %p39 = scmp.eq.s32.totalorder %s17, 1
      %p40 = por %p38, %p39
      %p42 = scmp.ne.s32.totalorder %s25, %s41
      %p43 = scmp.eq.s32.totalorder %s17, 0
      %p44 = por %p42, %p43
      %s45 = ssub.s32 %s11, %s18
      %p46 = scmp.eq.s32.totalorder %s45, 0
      %s48 = sadd.s32 %s47, 1
      %s49 = scalar_select %p46, %s47, %s48
      %p52 = pneg %p46
      %p53 = scmp.eq.s32.totalorder %s11, 1
      %p54 = por %p52, %p53
      %p55 = scmp.ne.s32.totalorder %s47, %s50
      %p56 = scmp.eq.s32.totalorder %s11, 0
      %p57 = por %p55, %p56
      %p58 = scmp.ne.s32.totalorder %s47, %s50
      %p59 = scmp.eq.s32.totalorder %s16, 1
      %p60 = por %p58, %p59
      %p61 = scmp.ne.s32.totalorder %s50, %s51
      %p62 = scmp.eq.s32.totalorder %s16, 0
      %p63 = por %p61, %p62
      %p64 = scmp.ne.s32.totalorder %s50, %s51
      %p65 = scmp.eq.s32.totalorder %s17, 1
      %p66 = por %p64, %p65
      %p68 = scmp.ne.s32.totalorder %s51, %s67
      %p69 = scmp.eq.s32.totalorder %s17, 0
      %p70 = por %p68, %p69
      %s71 = ssub.s32 %s11, %s18
      %p72 = scmp.eq.s32.totalorder %s71, 0
      %s74 = sadd.s32 %s73, 1
      %s75 = scalar_select %p72, %s73, %s74
      %p78 = pneg %p72
      %p79 = scmp.eq.s32.totalorder %s11, 1
      %p80 = por %p78, %p79
      %p81 = scmp.ne.s32.totalorder %s73, %s76
      %p82 = scmp.eq.s32.totalorder %s11, 0
      %p83 = por %p81, %p82
      %p84 = scmp.ne.s32.totalorder %s73, %s76
      %p85 = scmp.eq.s32.totalorder %s16, 1
      %p86 = por %p84, %p85
      %p87 = scmp.ne.s32.totalorder %s76, %s77
      %p88 = scmp.eq.s32.totalorder %s16, 0
      %p89 = por %p87, %p88
      %p90 = scmp.ne.s32.totalorder %s76, %s77
      %p91 = scmp.eq.s32.totalorder %s17, 1
      %p92 = por %p90, %p91
      %p94 = scmp.ne.s32.totalorder %s77, %s93
      %p95 = scmp.eq.s32.totalorder %s17, 0
      %p96 = por %p94, %p95
      %p97 = scmp.le.s32.totalorder 1, %s11
      %p98 = scmp.lt.s32.totalorder %s11, 3
      %p99 = pnand %p97, %p98
      %p100 = pneg %p99
      // Predicated region
      $region9: #{tpu_custom_call.1} parent=5 // pred_check
        _
      $region10: #{tpu_custom_call.1} parent=5 // pred_check_branch
        %102 = sbr.rel (%p99) target = $region12
      $region11: #{tpu_custom_call.1} parent=5 // pred_region
        %s103 = ssub.s32 %s11, 1
      $region12: #{tpu_custom_call.1} parent=5 // pred_fallthru
        _
      %p104 = scmp.lt.s32.totalorder %s11, 2
      // Predicated region
      $region13: #{tpu_custom_call.1} parent=5 // pred_check
        %p105 = pneg %p104
      $region14: #{tpu_custom_call.1} parent=5 // pred_check_branch
        %107 = sbr.rel (%p105) target = $region16
      $region15: #{tpu_custom_call.1} parent=5 // pred_region
        // Predicated region
        $region17: #{tpu_custom_call.1} parent=15 // pred_check
          %p108 = pneg %p31
        $region18: #{tpu_custom_call.1} parent=15 // pred_check_branch
          %110 = sbr.rel (%p108) target = $region20
        $region19: #{tpu_custom_call.1} parent=15 // pred_region
          %p111 = scmp.lt.s32.totalorder %s11, 1
          %s112 = scalar_select %p111, %s11, 1
          %s113 = smul.addr %s112, 8
          %s114 = scalar_lea.vmem %s0, %s113
        $region20: #{tpu_custom_call.1} parent=15 // pred_fallthru
          _
        // Predicated region
        $region21: #{tpu_custom_call.1} parent=15 // pred_check
          %p115 = pneg %p57
        $region22: #{tpu_custom_call.1} parent=15 // pred_check_branch
          %117 = sbr.rel (%p115) target = $region24
        $region23: #{tpu_custom_call.1} parent=15 // pred_region
          %p118 = scmp.lt.s32.totalorder %s11, 1
          %s119 = scalar_select %p118, %s11, 1
          %s120 = smul.addr %s119, 8
          %s121 = scalar_lea.vmem %s1, %s120
        $region24: #{tpu_custom_call.1} parent=15 // pred_fallthru
          _
      $region16: #{tpu_custom_call.1} parent=5 // pred_fallthru
        _
      %p122 = scmp.le.s32.totalorder 1, %s11
      %p123 = scmp.lt.s32.totalorder %s11, 3
      %p124 = pnand %p122, %p123
      %p125 = pneg %p124
      // Predicated region
      $region25: #{tpu_custom_call.1} parent=5 // pred_check
        _
      $region26: #{tpu_custom_call.1} parent=5 // pred_check_branch
        %127 = sbr.rel (%p124) target = $region28
      $region27: #{tpu_custom_call.1} parent=5 // pred_region
        %s128 = ssub.s32 %s11, 1
        %p129 = scmp.lt.s32.totalorder %s16, 1
        %s130 = scalar_select %p129, %s16, 1
        %s131 = smul.addr %s130, 8
        %s132 = scalar_lea.vmem %s0, %s131
        %p133 = pneg %p37
        %p134 = pneg %p34
        %p135 = scmp.lt.s32.totalorder %s16, 1
        %s136 = scalar_select %p135, %s16, 1
        %s137 = smul.addr %s136, 8
        %s138 = scalar_lea.vmem %s1, %s137
        %p139 = pneg %p63
        %p140 = pneg %p60
        %p141 = pneg %p89
        %p142 = pneg %p86
        %s143 = sand.u32 %s76, 1
        %s144 = scalar_lea.sflag [#allocation3], %s143
        %s145 = sand.u32 %s76, 1
        %s146 = smul.addr %s145, 8
        %s147 = scalar_lea.vmem [#allocation2], %s146
        %p148 = scmp.lt.s32.totalorder %s16, 1
        %s149 = scalar_select %p148, %s16, 1
        %s150 = smul.addr %s149, 8
        %s151 = scalar_lea.vmem %s0, %s150
        %p152 = scmp.lt.s32.totalorder %s16, 1
        %s153 = scalar_select %p152, %s16, 1
        %s154 = smul.addr %s153, 8
        %s155 = scalar_lea.vmem %s1, %s154
        %v156 = vld [vmem:[%s151] sm:$0xff]
        %v157 = vld [vmem:[%s155] sm:$0xff]
        %v158 = vlaneseq
        %v159 = vand.u32 %v158, 127
        %v160 = vlaneseq
        %v161 = vshrl.u32 %v160, 7
        %s162 = smul.u32 %s16, 8
        %v163 = vstv %s162
        %v164 = vadd.s32 %v161, %v163
        %vm165 = vcmp.ne.s32.totalorder %v157, 0
        %vm166 = vcmp.lt.s32.totalorder %v164, 16
        %vm167 = vmand %vm165, %vm166
        %vm168 = vcmask 261120
        %v169 = vsel %vm168, %v156, -inf
        %170 = vmax.xlane.f32.xlu0 %v169
        %v171 = vpop.xlane.xlu0 %170
        %v172 = vsub.f32 %v156, %v171
        %v173 = vmul.f32 %v172, 1.442695
        %v174 = vpow.pop %v173
        %v175 = vsel %vm168, %v174, 0.0
        %176 = vadd.xlane.f32.xlu0 %v175
        %v177 = vpop.xlane.xlu0 %176
        %v178 = vlog2.pop %v177
        %v179 = vmul.f32 %v178, 0.6931472
        %v180 = vadd.f32 %v171, %v179
        %v181 = vsel %vm168, %v156, 0.0
        %182 = vadd.xlane.f32.xlu0 %v181
        %v183 = vpop.xlane.xlu0 %182
        %184 = vset.pattern.permute.xlu0 0
        %185 = vperm.xlu0 %184, %v157
        %v186 = vpop.permute.xlu0 %185
        %vm187 = vcmp.eq.s32.totalorder %v159, %v186
        %v188 = vsel %vm187, %v156, 0.0
        %v189 = vsel %vm168, %v188, 0.0
        %190 = vadd.xlane.f32.xlu0 %v189
        %v191 = vpop.xlane.xlu0 %190
        %v192 = vsub.f32 %v180, %v191
        %v193 = vmul.f32 %v192, 0.9
        %v194 = vrcp.pop 32.0
        %v195 = vmul.f32 32.0, %v194
        %v196 = vsub.f32 1.0, %v195
        %v197 = vmul.f32 %v194, %v196
        %v198 = vadd.f32 %v194, %v197
        %vm199 = vweird.f32 %v194
        %v200 = vsel %vm199, %v194, %v198
        %v201 = vmul.f32 %v183, %v200
        %v202 = vsub.f32 %v180, %v201
        %v203 = vmul.f32 %v202, 0.1
        %v204 = vadd.f32 %v193, %v203
        %v205 = vsel %vm167, %v204, 0.0
        %v206 = vsel %vm167, 1.0, 0.0
        %vm207 = vcmask 7168
        %v208 = vsel %vm207, %v205, 0.0
        %209 = vadd.xlane.f32.xlu0 %v208
        %v210 = vpop.xlane.xlu0 %209
        %v211 = vrot.slane %v210, 4
        %v212 = vadd.f32 %v210, %v211
        %v213 = vrot.slane %v212, 2
        %v214 = vadd.f32 %v212, %v213
        %v215 = vrot.slane %v214, 1
        %v216 = vadd.f32 %v214, %v215
        %s217 = vtos %v216
        %v218 = vsel %vm207, %v206, 0.0
        %219 = vadd.xlane.f32.xlu0 %v218
        %v220 = vpop.xlane.xlu0 %219
        %v221 = vrot.slane %v220, 4
        %v222 = vadd.f32 %v220, %v221
        %v223 = vrot.slane %v222, 2
        %v224 = vadd.f32 %v222, %v223
        %v225 = vrot.slane %v224, 1
        %v226 = vadd.f32 %v224, %v225
        %s227 = vtos %v226
        %vm228 = vcmp.eq.s32.totalorder %v161, 0
        %vm229 = vcmp.eq.s32.totalorder %v159, 0
        %vm230 = vmand %vm228, %vm229
        %v231 = vstv %s217
        %v232 = vsel %vm230, %v231, 0.0
        %vm233 = vcmp.eq.s32.totalorder %v159, 1
        %vm234 = vmand %vm228, %vm233
        %v235 = vstv %s227
        %v236 = vsel %vm234, %v235, %v232
        %237 = vst [vmem:[%s147] sm:$0xff] %v236
        %s238 = sand.u32 %s76, 1
        %s239 = scalar_lea.sflag [#allocation3], %s238
        %s240 = sand.u32 %s76, 1
        %s241 = smul.addr %s240, 8
        %s242 = scalar_lea.vmem [#allocation2], %s241
        // Predicated region
        $region29: #{tpu_custom_call.1} parent=27 // pred_check
          %p243 = pneg %p86
        $region30: #{tpu_custom_call.1} parent=27 // pred_check_branch
          %245 = sbr.rel (%p243) target = $region32
        $region31: #{tpu_custom_call.1} parent=27 // pred_region
          %247 = vsyncadd %s239, 0
          %s248 = smul.addr %s16, 8
          %s249 = scalar_lea.hbm %s2, %s248
          %s251 = sshll.u32 %s242, 4
          %s252 = int_to_ptr.vmem [resolvable:$true] %s251
          %s253 = sshll.u32 %s249, 4
          %s254 = int_to_ptr.hbm [resolvable:$true] %s253
          %256 = dma.vmem_to_hbm [thread:$0]  %s252, 128, %s254, %s239
        $region32: #{tpu_custom_call.1} parent=27 // pred_fallthru
          _
      $region28: #{tpu_custom_call.1} parent=5 // pred_fallthru
        _
      %p257 = scmp.le.s32.totalorder 2, %s11
      // Predicated region
      $region33: #{tpu_custom_call.1} parent=5 // pred_check
        %p258 = pneg %p257
      $region34: #{tpu_custom_call.1} parent=5 // pred_check_branch
        %260 = sbr.rel (%p258) target = $region36
      $region35: #{tpu_custom_call.1} parent=5 // pred_region
        %s261 = ssub.s32 %s11, 2
        // Predicated region
        $region37: #{tpu_custom_call.1} parent=35 // pred_check
          %p262 = pneg %p92
        $region38: #{tpu_custom_call.1} parent=35 // pred_check_branch
          %264 = sbr.rel (%p262) target = $region40
        $region39: #{tpu_custom_call.1} parent=35 // pred_region
          %s265 = sand.u32 %s77, 1
          %s266 = scalar_lea.sflag [#allocation3], %s265
          %s267 = sand.u32 %s77, 1
          %s268 = smul.addr %s267, 8
          %s269 = scalar_lea.vmem [#allocation2], %s268
          %271 = dma.done %s266, 128
        $region40: #{tpu_custom_call.1} parent=35 // pred_fallthru
          _
      $region36: #{tpu_custom_call.1} parent=5 // pred_fallthru
        _
    $region6: #{tpu_custom_call.1} parent=1 // loop_footer
      %s15 = sadd.s32 1, %s11
    $region7: #{tpu_custom_call.1} parent=1 // loop_footer_branch
      %10 = sbr.rel target = $region3
    $region8: #{tpu_custom_call.1} parent=1 // loop_exit
      _
    %272 = vsyncpa [#allocation3], 1
    %s273 = scalar_lea.sflag [#allocation3], 1
    %274 = vsyncpa %s273, 1

</llo_original>
